<compile_context>
chip_gen: v7x
topology: tpu7x:2x2x1
jax: 0.10.0
libtpu: 0.0.40
codegen_flags: <defaults>
</compile_context>

<pallas_src>
import jax
import jax.numpy as jnp
from jax.experimental import pallas as pl
from jax.experimental.pallas import tpu as pltpu


def _mlp_kernel(zt_ref, w0_ref, b0_ref, w1_ref, b1_ref, w2_ref, b2_ref, out_ref):
    # Layer 0: [H, in_dim] @ [in_dim, TB] -> [H, TB], lane-dense.
    h0 = jnp.tanh(
        jnp.dot(w0_ref[...], zt_ref[...], preferred_element_type=jnp.float32)
        + b0_ref[...]
    )
    # Layer 1: [H, H] @ [H, TB] -> [H, TB].
    h1 = jnp.tanh(
        jnp.dot(w1_ref[...], h0, preferred_element_type=jnp.float32)
        + b1_ref[...]
    )
    # Output layer: [2*out, H] @ [H, TB] -> [2*out, TB], single lane-dense store.
    out_ref[...] = (
        jnp.dot(w2_ref[...], h1, preferred_element_type=jnp.float32)
        + b2_ref[...]
    ).astype(out_ref.dtype)


def _round_up(a, m):
    return ((a + m - 1) // m) * m


def mlp_grad_complex_forward(n, x, p, params, *, tb=8192):
    """n: [B, input_dim], x: [B, 1], p: [B, 1]  ->  complex64 [B, output_dim]."""
    w0, b0, w1, b1, w2, b2 = params       # weights [out, in], biases [out, 1]
    B = n.shape[0]
    in_dim = w0.shape[1]                  # input_dim + 2
    H = w0.shape[0]
    out2 = w2.shape[0]
    output_dim = out2 // 2

    # Batch tile: multiple of 512 (lane 128 / MXU-N 256 friendly), shrunk for
    # tiny batches so the demo doesn't pad 8 -> 8192.
    tb_eff = max(512, min(_round_up(tb, 512), _round_up(B, 512)))
    b_pad = _round_up(B, tb_eff)
    grid = (b_pad // tb_eff,)

    # Single fused z^T build: concat + transpose + pad (one XLA copy under jit).
    z = jnp.concatenate(
        [n.astype(jnp.float32), x.astype(jnp.float32), p.astype(jnp.float32)],
        axis=1,
    )                                     # [B, in_dim]
    zt = jnp.pad(z.T, ((0, 0), (0, b_pad - B)))   # [in_dim, b_pad]

    def batch_spec(feat):
        return pl.BlockSpec((feat, tb_eff), lambda i: (0, i))

    def const_spec(shape):
        return pl.BlockSpec(shape, lambda i: (0, 0))

    # Explicit scoped-VMEM budget (x2 headroom, generation-safe 16..48 MiB clamp;
    # v7x has only 64 MiB physical VMEM per TensorCore).
    vmem_need = 4 * (
        2 * in_dim * tb_eff               # double-buffered z^T blocks
        + 2 * out2 * tb_eff               # double-buffered output blocks
        + 4 * H * tb_eff                  # h0 / h1 / pre-activation temporaries
        + H * (in_dim + H) + out2 * H     # resident weights
        + 2 * H + out2                    # resident biases
    )
    vmem_limit = int(min(max(2 * vmem_need, 16 * 1024 * 1024), 48 * 1024 * 1024))

    y = pl.pallas_call(
        _mlp_kernel,
        out_shape=jax.ShapeDtypeStruct((out2, b_pad), jnp.float32),
        grid_spec=pltpu.PrefetchScalarGridSpec(
            num_scalar_prefetch=0,
            grid=grid,
            in_specs=[
                batch_spec(in_dim),              # z^T  [in_dim, TB] (streaming)
                const_spec((H, in_dim)),         # W0   (VMEM-resident)
                const_spec((H, 1)),              # b0
                const_spec((H, H)),              # W1
                const_spec((H, 1)),              # b1
                const_spec((out2, H)),           # W2
                const_spec((out2, 1)),           # b2
            ],
            out_specs=batch_spec(out2),          # y^T  [2*out, TB], lane-dense
        ),
        compiler_params=pltpu.CompilerParams(
            dimension_semantics=("parallel",),
            vmem_limit_bytes=vmem_limit,
        ),
    )(zt, w0, b0, w1, b1, w2, b2)

    # Glue (fuses under jit): split real/imag rows, drop pad, restore [B, out].
    y_re = y[:output_dim, :B]
    y_im = y[output_dim:, :B]
    return jax.lax.complex(y_re, y_im).T


def init_params(key, input_dim, output_dim, hidden_dim):
    """Deterministic init matching nn.Linear shapes (weights stored [out, in])."""
    in_dim = input_dim + 2          # MLPGradComplex adds 2 input features
    out_dim = 2 * output_dim        # MLPComplex doubles the output (real/imag)

    def linear(k, fan_in, fan_out):
        kw, kb = jax.random.split(k)
        bound = 1.0 / jnp.sqrt(fan_in)
        w = jax.random.uniform(kw, (fan_out, fan_in), jnp.float32, -bound, bound)
        b = jax.random.uniform(kb, (fan_out, 1), jnp.float32, -bound, bound)
        return w, b

    k0, k1, k2 = jax.random.split(key, 3)
    w0, b0 = linear(k0, in_dim, hidden_dim)      # hidden_layer_0
    w1, b1 = linear(k1, hidden_dim, hidden_dim)  # hidden_layer_1
    w2, b2 = linear(k2, hidden_dim, out_dim)     # output_layer
    return (w0, b0, w1, b1, w2, b2)


if __name__ == "__main__":
    # small shapes: batch=8, input_dim=4 (concatenated dim = 6),
    # hidden_dim=32, output_dim=4 (raw linear output = 8)
    B, INPUT_DIM, OUTPUT_DIM, HIDDEN_DIM = 8, 4, 4, 32

    key = jax.random.PRNGKey(0)
    kn, kx, kp, kparam = jax.random.split(key, 4)

    n = jax.random.normal(kn, (B, INPUT_DIM), jnp.float32)
    x = jax.random.normal(kx, (B, 1), jnp.float32)
    p = jax.random.normal(kp, (B, 1), jnp.float32)

    params = init_params(kparam, INPUT_DIM, OUTPUT_DIM, HIDDEN_DIM)

    fwd = jax.jit(mlp_grad_complex_forward)
    out = jax.block_until_ready(fwd(n, x, p, params))

    assert out.shape == (B, OUTPUT_DIM)
    assert jnp.iscomplexobj(out)

    # reference check in plain JAX (weights are [out, in], biases [out, 1])
    w0, b0, w1, b1, w2, b2 = params
    z = jnp.concatenate([n, x, p], axis=1)
    h0 = jnp.tanh(z @ w0.T + b0.T)
    h1 = jnp.tanh(h0 @ w1.T + b1.T)
    y = h1 @ w2.T + b2.T
    ref = y[:, :OUTPUT_DIM] + 1j * y[:, OUTPUT_DIM:]
    assert jnp.allclose(out, ref, atol=1e-4, rtol=1e-4)

    print("KERNEL_OK")
</pallas_src>

<mosaic_0001>
module attributes {stable_mosaic.version = 11 : i64} {
  func.func @_mlp_kernel(%arg0: i32, %arg1: memref<6x512xf32, #tpu.memory_space<vmem>>, %arg2: memref<32x6xf32, #tpu.memory_space<vmem>>, %arg3: memref<32x1xf32, #tpu.memory_space<vmem>>, %arg4: memref<32x32xf32, #tpu.memory_space<vmem>>, %arg5: memref<32x1xf32, #tpu.memory_space<vmem>>, %arg6: memref<8x32xf32, #tpu.memory_space<vmem>>, %arg7: memref<8x1xf32, #tpu.memory_space<vmem>>, %arg8: memref<8x512xf32, #tpu.memory_space<vmem>>) attributes {dimension_semantics = [#tpu.dimension_semantics<parallel>], iteration_bounds = array<i64: 1>, scalar_prefetch = 0 : i64, scratch_operands = 0 : i64, tpu.core_type = #tpu.core_type<tc>, window_params = [{transform_indices = @transform_0, window_bounds = array<i64: 6, 512>}, {pipeline_mode = #tpu.pipeline_mode<synchronous>, transform_indices = @transform_1, window_bounds = array<i64: 32, 6>}, {pipeline_mode = #tpu.pipeline_mode<synchronous>, transform_indices = @transform_2, window_bounds = array<i64: 32, 1>}, {pipeline_mode = #tpu.pipeline_mode<synchronous>, transform_indices = @transform_3, window_bounds = array<i64: 32, 32>}, {pipeline_mode = #tpu.pipeline_mode<synchronous>, transform_indices = @transform_4, window_bounds = array<i64: 32, 1>}, {pipeline_mode = #tpu.pipeline_mode<synchronous>, transform_indices = @transform_5, window_bounds = array<i64: 8, 32>}, {pipeline_mode = #tpu.pipeline_mode<synchronous>, transform_indices = @transform_6, window_bounds = array<i64: 8, 1>}, {transform_indices = @transform_7, window_bounds = array<i64: 8, 512>}]} {
    %c0 = arith.constant 0 : index
    %c0_0 = arith.constant 0 : index
    %0 = vector.load %arg2[%c0, %c0_0] : memref<32x6xf32, #tpu.memory_space<vmem>>, vector<32x6xf32>
    %c0_1 = arith.constant 0 : index
    %c0_2 = arith.constant 0 : index
    %1 = vector.load %arg1[%c0_1, %c0_2] : memref<6x512xf32, #tpu.memory_space<vmem>>, vector<6x512xf32>
    %cst = arith.constant dense<0.000000e+00> : vector<32x512xf32>
    %2 = tpu.matmul %0, %1, %cst {dimension_numbers = #tpu.dot_dimension_numbers<[1], [0], [0], [1], [0, 0, 1, 1], [], []>} : vector<32x6xf32>, vector<6x512xf32>, vector<32x512xf32> -> vector<32x512xf32>
    %c0_3 = arith.constant 0 : index
    %c0_4 = arith.constant 0 : index
    %3 = vector.load %arg3[%c0_3, %c0_4] : memref<32x1xf32, #tpu.memory_space<vmem>>, vector<32x1xf32>
    %4 = vector.broadcast %3 : vector<32x1xf32> to vector<32x512xf32>
    %5 = arith.addf %2, %4 : vector<32x512xf32>
    %6 = math.tanh %5 : vector<32x512xf32>
    %c0_5 = arith.constant 0 : index
    %c0_6 = arith.constant 0 : index
    %7 = vector.load %arg4[%c0_5, %c0_6] : memref<32x32xf32, #tpu.memory_space<vmem>>, vector<32x32xf32>
    %cst_7 = arith.constant dense<0.000000e+00> : vector<32x512xf32>
    %8 = tpu.matmul %7, %6, %cst_7 {dimension_numbers = #tpu.dot_dimension_numbers<[1], [0], [0], [1], [0, 0, 1, 1], [], []>} : vector<32x32xf32>, vector<32x512xf32>, vector<32x512xf32> -> vector<32x512xf32>
    %c0_8 = arith.constant 0 : index
    %c0_9 = arith.constant 0 : index
    %9 = vector.load %arg5[%c0_8, %c0_9] : memref<32x1xf32, #tpu.memory_space<vmem>>, vector<32x1xf32>
    %10 = vector.broadcast %9 : vector<32x1xf32> to vector<32x512xf32>
    %11 = arith.addf %8, %10 : vector<32x512xf32>
    %12 = math.tanh %11 : vector<32x512xf32>
    %c0_10 = arith.constant 0 : index
    %c0_11 = arith.constant 0 : index
    %13 = vector.load %arg6[%c0_10, %c0_11] : memref<8x32xf32, #tpu.memory_space<vmem>>, vector<8x32xf32>
    %cst_12 = arith.constant dense<0.000000e+00> : vector<8x512xf32>
    %14 = tpu.matmul %13, %12, %cst_12 {dimension_numbers = #tpu.dot_dimension_numbers<[1], [0], [0], [1], [0, 0, 1, 1], [], []>} : vector<8x32xf32>, vector<32x512xf32>, vector<8x512xf32> -> vector<8x512xf32>
    %c0_13 = arith.constant 0 : index
    %c0_14 = arith.constant 0 : index
    %15 = vector.load %arg7[%c0_13, %c0_14] : memref<8x1xf32, #tpu.memory_space<vmem>>, vector<8x1xf32>
    %16 = vector.broadcast %15 : vector<8x1xf32> to vector<8x512xf32>
    %17 = arith.addf %14, %16 : vector<8x512xf32>
    %c0_15 = arith.constant 0 : index
    %c0_16 = arith.constant 0 : index
    %18 = vector.load %arg8[%c0_15, %c0_16] : memref<8x512xf32, #tpu.memory_space<vmem>>, vector<8x512xf32>
    tpu.vector_store %arg8[%c0_15, %c0_16], %17 {strides = array<i32>} : memref<8x512xf32, #tpu.memory_space<vmem>>, vector<8x512xf32>,
    return
  }
  func.func @transform_0(%arg0: i32) -> (i32, i32) {
    %c0_i32 = arith.constant 0 : i32
    %c0_i32_0 = arith.constant 0 : i32
    return %c0_i32, %arg0 : i32, i32
  }
  func.func @transform_1(%arg0: i32) -> (i32, i32) {
    %c0_i32 = arith.constant 0 : i32
    %c0_i32_0 = arith.constant 0 : i32
    %c0_i32_1 = arith.constant 0 : i32
    return %c0_i32, %c0_i32_0 : i32, i32
  }
  func.func @transform_2(%arg0: i32) -> (i32, i32) {
    %c0_i32 = arith.constant 0 : i32
    %c0_i32_0 = arith.constant 0 : i32
    %c0_i32_1 = arith.constant 0 : i32
    return %c0_i32, %c0_i32_0 : i32, i32
  }
  func.func @transform_3(%arg0: i32) -> (i32, i32) {
    %c0_i32 = arith.constant 0 : i32
    %c0_i32_0 = arith.constant 0 : i32
    %c0_i32_1 = arith.constant 0 : i32
    return %c0_i32, %c0_i32_0 : i32, i32
  }
  func.func @transform_4(%arg0: i32) -> (i32, i32) {
    %c0_i32 = arith.constant 0 : i32
    %c0_i32_0 = arith.constant 0 : i32
    %c0_i32_1 = arith.constant 0 : i32
    return %c0_i32, %c0_i32_0 : i32, i32
  }
  func.func @transform_5(%arg0: i32) -> (i32, i32) {
    %c0_i32 = arith.constant 0 : i32
    %c0_i32_0 = arith.constant 0 : i32
    %c0_i32_1 = arith.constant 0 : i32
    return %c0_i32, %c0_i32_0 : i32, i32
  }
  func.func @transform_6(%arg0: i32) -> (i32, i32) {
    %c0_i32 = arith.constant 0 : i32
    %c0_i32_0 = arith.constant 0 : i32
    %c0_i32_1 = arith.constant 0 : i32
    return %c0_i32, %c0_i32_0 : i32, i32
  }
  func.func @transform_7(%arg0: i32) -> (i32, i32) {
    %c0_i32 = arith.constant 0 : i32
    %c0_i32_0 = arith.constant 0 : i32
    return %c0_i32, %arg0 : i32, i32
  }
}

</mosaic_0001>

<llo_original>
// kernel: custom-call
$region0: #{custom-call}
  %s0 = inlined_call_operand.vmem [shape: f32[8,4], index: 0, kind: input, shape index: {}]
  %s1 = inlined_call_operand.vmem [shape: f32[8,4], index: 1, kind: input, shape index: {}]
  %s2 = inlined_call_operand.hbm [shape: c64[8,4], index: 2, kind: output, shape index: {}]
  %s3 = scalar_lea.hbm %s2, 64
  $region1: #{custom-call} parent=0
    #allocation0 [shape = 's32[1]{0}', space=sflag, size = 0x4, scoped, tag = 'scoped memory for custom-call']
    %4 = vsyncpa [#allocation0], 0
    %s5 = sshll.u32 %s0, 4
    %s6 = int_to_ptr.vmem [resolvable:$true] %s5
    %8 = dma.vmem_to_hbm [thread:$0]  %s6, 64, %s2, [#allocation0]
    %9 = dma.done [#allocation0], 64
    %10 = vsyncpa [#allocation0], 1
  $region2: #{custom-call} parent=0
    #allocation1 [shape = 's32[1]{0}', space=sflag, size = 0x4, scoped, tag = 'scoped memory for custom-call']
    %11 = vsyncpa [#allocation1], 0
    %s12 = sshll.u32 %s1, 4
    %s13 = int_to_ptr.vmem [resolvable:$true] %s12
    %15 = dma.vmem_to_hbm [thread:$0]  %s13, 64, %s3, [#allocation1]
    %16 = dma.done [#allocation1], 64
    %17 = vsyncpa [#allocation1], 1

// kernel: mlp_grad_complex_forward.1
$region0: #{mlp_grad_complex_forward.1}
  #allocation0 [shape = 'u32[]', space=smem, size = 0x4, offset = 0x4, fixed_abs, tag = 'smem constant byte address 0x4 - core index']
  #allocation1 [shape = 'u32[144,128]{1,0:T(1,128)}', space=vmem, size = 0x12000, scoped, tag = 'internal scratch']
  %s0 = inlined_call_operand.vmem [shape: f32[6,512], index: 0, kind: input, shape index: {}]
  %s1 = inlined_call_operand.vmem [shape: f32[32,6], index: 1, kind: input, shape index: {}]
  %s2 = inlined_call_operand.vmem [shape: f32[32,1], index: 2, kind: input, shape index: {}]
  %s3 = inlined_call_operand.vmem [shape: f32[32,32], index: 3, kind: input, shape index: {}]
  %s4 = inlined_call_operand.vmem [shape: f32[32,1], index: 4, kind: input, shape index: {}]
  %s5 = inlined_call_operand.vmem [shape: f32[8,32], index: 5, kind: input, shape index: {}]
  %s6 = inlined_call_operand.vmem [shape: f32[8,1], index: 6, kind: input, shape index: {}]
  %s7 = inlined_call_operand.vmem [shape: f32[8,512], index: 7, kind: output, shape index: {}]
  %s8 = sld [smem:[#allocation0]]
  $region38: #{mlp_grad_complex_forward.1} parent=0
    _
  %s10 = ssub.s32 1, %s8
  %s11 = scalar_select 0, %s10, %s8
  // Predicated region
  $region2: #{mlp_grad_complex_forward.1} parent=0 // pred_check
    _
  $region3: #{mlp_grad_complex_forward.1} parent=0 // pred_check_branch
    %13 = sbr.rel (0) target = $region5
  $region4: #{mlp_grad_complex_forward.1} parent=0 // pred_region
    _
  $region5: #{mlp_grad_complex_forward.1} parent=0 // pred_fallthru
    _
  // Predicated region
  $region6: #{mlp_grad_complex_forward.1} parent=0 // pred_check
    _
  $region7: #{mlp_grad_complex_forward.1} parent=0 // pred_check_branch
    %15 = sbr.rel (0) target = $region9
  $region8: #{mlp_grad_complex_forward.1} parent=0 // pred_region
    _
  $region9: #{mlp_grad_complex_forward.1} parent=0 // pred_fallthru
    _
  // Predicated region
  $region10: #{mlp_grad_complex_forward.1} parent=0 // pred_check
    _
  $region11: #{mlp_grad_complex_forward.1} parent=0 // pred_check_branch
    %17 = sbr.rel (0) target = $region13
  $region12: #{mlp_grad_complex_forward.1} parent=0 // pred_region
    _
  $region13: #{mlp_grad_complex_forward.1} parent=0 // pred_fallthru
    _
  // Predicated region
  $region14: #{mlp_grad_complex_forward.1} parent=0 // pred_check
    _
  $region15: #{mlp_grad_complex_forward.1} parent=0 // pred_check_branch
    %19 = sbr.rel (0) target = $region17
  $region16: #{mlp_grad_complex_forward.1} parent=0 // pred_region
    _
  $region17: #{mlp_grad_complex_forward.1} parent=0 // pred_fallthru
    _
  // Predicated region
  $region18: #{mlp_grad_complex_forward.1} parent=0 // pred_check
    _
  $region19: #{mlp_grad_complex_forward.1} parent=0 // pred_check_branch
    %21 = sbr.rel (0) target = $region21
  $region20: #{mlp_grad_complex_forward.1} parent=0 // pred_region
    _
  $region21: #{mlp_grad_complex_forward.1} parent=0 // pred_fallthru
    _
  // Predicated region
  $region22: #{mlp_grad_complex_forward.1} parent=0 // pred_check
    _
  $region23: #{mlp_grad_complex_forward.1} parent=0 // pred_check_branch
    %23 = sbr.rel (0) target = $region25
  $region24: #{mlp_grad_complex_forward.1} parent=0 // pred_region
    _
  $region25: #{mlp_grad_complex_forward.1} parent=0 // pred_fallthru
    _
  // Predicated region
  $region26: #{mlp_grad_complex_forward.1} parent=0 // pred_check
    _
  $region27: #{mlp_grad_complex_forward.1} parent=0 // pred_check_branch
    %25 = sbr.rel (0) target = $region29
  $region28: #{mlp_grad_complex_forward.1} parent=0 // pred_region
    _
  $region29: #{mlp_grad_complex_forward.1} parent=0 // pred_fallthru
    _
  %v26 = vld [vmem:[%s1] sm:$0xff]
  %v27 = vld [vmem:[%s1 + $0x8] sm:$0xff]
  %v28 = vld [vmem:[%s1 + $0x10] sm:$0xff]
  %v29 = vld [vmem:[%s1 + $0x18] sm:$0xff]
  %v30 = vld [vmem:[%s0] sm:$0x3f]
  %v31 = vld [vmem:[%s0 + $0x8] sm:$0x3f]
  %v32 = vld [vmem:[%s0 + $0x10] sm:$0x3f]
  %v33 = vld [vmem:[%s0 + $0x18] sm:$0x3f]
  %v34 = vld [vmem:[%s2] sm:$0xff]
  %v35 = vld [vmem:[%s2 + $0x8] sm:$0xff]
  %v36 = vld [vmem:[%s2 + $0x10] sm:$0xff]
  %v37 = vld [vmem:[%s2 + $0x18] sm:$0xff]
  %39 = vset.pattern.permute.xlu0 0
  %40 = vperm.xlu0 %39, %v34
  %v41 = vpop.permute.xlu0 %40
  %44 = vset.pattern.permute.xlu0 0
  %45 = vperm.xlu0 %44, %v35
  %v46 = vpop.permute.xlu0 %45
  %49 = vset.pattern.permute.xlu0 0
  %50 = vperm.xlu0 %49, %v36
  %v51 = vpop.permute.xlu0 %50
  %54 = vset.pattern.permute.xlu0 0
  %55 = vperm.xlu0 %54, %v37
  %v56 = vpop.permute.xlu0 %55
  %vm58 = vcmask 48128
  %v60 = vsel %vm58, %v26, 0
  %v63 = vsel %vm58, %v27, 0
  %v66 = vsel %vm58, %v28, 0
  %v69 = vsel %vm58, %v29, 0
  %vm71 = vcmask 1045504
  %v73 = vsel %vm71, %v30, 0
  %v76 = vsel %vm71, %v31, 0
  %v79 = vsel %vm71, %v32, 0
  %v82 = vsel %vm71, %v33, 0
  %84 = vmatprep.subr.mxu0 %v76
  %85 = vmatpush1.msra.mxu0 %v73
  %86 = vmatprep.subr.mxu0 0.0
  %87 = vmatpush1.msra.mxu0 0.0
  %88 = vmatprep.subr.mxu0 0.0
  %89 = vmatpush1.msra.mxu0 0.0
  %90 = vmatprep.subr.mxu0 0.0
  %91 = vmatpush1.msra.mxu0 0.0
  %92 = vmatprep.subr.mxu0 0.0
  %93 = vmatpush1.msra.mxu0 0.0
  %94 = vmatprep.subr.mxu0 0.0
  %95 = vmatpush1.msra.mxu0 0.0
  %96 = vmatprep.subr.mxu0 0.0
  %97 = vmatpush1.msra.mxu0 0.0
  %98 = vmatprep.subr.mxu0 0.0
  %99 = vmatpush1.msra.mxu0 0.0
  %100 = vmatprep.subr.mxu0 0.0
  %101 = vmatpush1.msra.mxu0 0.0
  %102 = vmatprep.subr.mxu0 0.0
  %103 = vmatpush1.msra.mxu0 0.0
  %104 = vmatprep.subr.mxu0 0.0
  %105 = vmatpush1.msra.mxu0 0.0
  %106 = vmatprep.subr.mxu0 0.0
  %107 = vmatpush1.msra.mxu0 0.0
  %108 = vmatprep.subr.mxu0 0.0
  %109 = vmatpush1.msra.mxu0 0.0
  %110 = vmatprep.subr.mxu0 0.0
  %111 = vmatpush1.msra.mxu0 0.0
  %112 = vmatprep.subr.mxu0 0.0
  %113 = vmatpush1.msra.mxu0 0.0
  %114 = vmatprep.subr.mxu0 0.0
  %115 = vmatpush1.msra.mxu0 0.0
  %116 = vmatprep.subr.mxu0 0.0
  %117 = vmatpush1.msra.mxu0 0.0
  %118 = vmatprep.subr.mxu0 0.0
  %119 = vmatpush1.msra.mxu0 0.0
  %120 = vmatprep.subr.mxu0 0.0
  %121 = vmatpush1.msra.mxu0 0.0
  %122 = vmatprep.subr.mxu0 0.0
  %123 = vmatpush1.msra.mxu0 0.0
  %124 = vmatprep.subr.mxu0 0.0
  %125 = vmatpush1.msra.mxu0 0.0
  %126 = vmatprep.subr.mxu0 0.0
  %127 = vmatpush1.msra.mxu0 0.0
  %128 = vmatprep.subr.mxu0 0.0
  %129 = vmatpush1.msra.mxu0 0.0
  %130 = vmatprep.subr.mxu0 0.0
  %131 = vmatpush1.msra.mxu0 0.0
  %132 = vmatprep.subr.mxu0 0.0
  %133 = vmatpush1.msra.mxu0 0.0
  %134 = vmatprep.subr.mxu0 0.0
  %135 = vmatpush1.msra.mxu0 0.0
  %136 = vmatprep.subr.mxu0 0.0
  %137 = vmatpush1.msra.mxu0 0.0
  %138 = vmatprep.subr.mxu0 0.0
  %139 = vmatpush1.msra.mxu0 0.0
  %140 = vmatprep.subr.mxu0 0.0
  %141 = vmatpush1.msra.mxu0 0.0
  %142 = vmatprep.subr.mxu0 0.0
  %143 = vmatpush1.msra.mxu0 0.0
  %144 = vmatprep.subr.mxu0 0.0
  %145 = vmatpush1.msra.mxu0 0.0
  %146 = vmatprep.subr.mxu0 0.0
  %147 = vmatpush1.msra.mxu0 0.0
  %148 = vmatprep.mubr.f32.mxu0 0.0
  %149 = vmatmul.mubr.f32.gmra.mrb[0].mxu0 %v60
  %v150 = vpop.f32.mrb[0].mxu0
  %v151 = vadd.f32 %v41, %v150
  %v152 = vpop.f32.mrb[0].mxu0
  %v153 = vadd.f32 %v41, %v152
  %154 = vmatprep.mubr.f32.mxu0 0.0
  %155 = vmatmul.mubr.f32.gmra.mrb[0].mxu0 %v63
  %v156 = vpop.f32.mrb[0].mxu0
  %v157 = vadd.f32 %v46, %v156
  %v158 = vpop.f32.mrb[0].mxu0
  %v159 = vadd.f32 %v46, %v158
  %160 = vmatprep.mubr.f32.mxu0 0.0
  %161 = vmatmul.mubr.f32.gmra.mrb[0].mxu0 %v66
  %v162 = vpop.f32.mrb[0].mxu0
  %v163 = vadd.f32 %v51, %v162
  %v164 = vpop.f32.mrb[0].mxu0
  %v165 = vadd.f32 %v51, %v164
  %166 = vmatprep.mubr.f32.mxu0 0.0
  %167 = vmatmul.mubr.f32.gmra.mrb[0].mxu0 %v69
  %v168 = vpop.f32.mrb[0].mxu0
  %v169 = vadd.f32 %v56, %v168
  %v170 = vpop.f32.mrb[0].mxu0
  %v171 = vadd.f32 %v56, %v170
  %172 = vdwg.mxu0
  %173 = vmatprep.subr.mxu0 %v82
  %174 = vmatpush1.msra.mxu0 %v79
  %175 = vmatprep.subr.mxu0 0.0
  %176 = vmatpush1.msra.mxu0 0.0
  %177 = vmatprep.subr.mxu0 0.0
  %178 = vmatpush1.msra.mxu0 0.0
  %179 = vmatprep.subr.mxu0 0.0
  %180 = vmatpush1.msra.mxu0 0.0
  %181 = vmatprep.subr.mxu0 0.0
  %182 = vmatpush1.msra.mxu0 0.0
  %183 = vmatprep.subr.mxu0 0.0
  %184 = vmatpush1.msra.mxu0 0.0
  %185 = vmatprep.subr.mxu0 0.0
  %186 = vmatpush1.msra.mxu0 0.0
  %187 = vmatprep.subr.mxu0 0.0
  %188 = vmatpush1.msra.mxu0 0.0
  %189 = vmatprep.subr.mxu0 0.0
  %190 = vmatpush1.msra.mxu0 0.0
  %191 = vmatprep.subr.mxu0 0.0
  %192 = vmatpush1.msra.mxu0 0.0
  %193 = vmatprep.subr.mxu0 0.0
  %194 = vmatpush1.msra.mxu0 0.0
  %195 = vmatprep.subr.mxu0 0.0
  %196 = vmatpush1.msra.mxu0 0.0
  %197 = vmatprep.subr.mxu0 0.0
  %198 = vmatpush1.msra.mxu0 0.0
  %199 = vmatprep.subr.mxu0 0.0
  %200 = vmatpush1.msra.mxu0 0.0
  %201 = vmatprep.subr.mxu0 0.0
  %202 = vmatpush1.msra.mxu0 0.0
  %203 = vmatprep.subr.mxu0 0.0
  %204 = vmatpush1.msra.mxu0 0.0
  %205 = vmatprep.subr.mxu0 0.0
  %206 = vmatpush1.msra.mxu0 0.0
  %207 = vmatprep.subr.mxu0 0.0
  %208 = vmatpush1.msra.mxu0 0.0
  %209 = vmatprep.subr.mxu0 0.0
  %210 = vmatpush1.msra.mxu0 0.0
  %211 = vmatprep.subr.mxu0 0.0
  %212 = vmatpush1.msra.mxu0 0.0
  %213 = vmatprep.subr.mxu0 0.0
  %214 = vmatpush1.msra.mxu0 0.0
  %215 = vmatprep.subr.mxu0 0.0
  %216 = vmatpush1.msra.mxu0 0.0
  %217 = vmatprep.subr.mxu0 0.0
  %218 = vmatpush1.msra.mxu0 0.0
  %219 = vmatprep.subr.mxu0 0.0
  %220 = vmatpush1.msra.mxu0 0.0
  %221 = vmatprep.subr.mxu0 0.0
  %222 = vmatpush1.msra.mxu0 0.0
  %223 = vmatprep.subr.mxu0 0.0
  %224 = vmatpush1.msra.mxu0 0.0
  %225 = vmatprep.subr.mxu0 0.0
  %226 = vmatpush1.msra.mxu0 0.0
  %227 = vmatprep.subr.mxu0 0.0
  %228 = vmatpush1.msra.mxu0 0.0
  %229 = vmatprep.subr.mxu0 0.0
  %230 = vmatpush1.msra.mxu0 0.0
  %231 = vmatprep.subr.mxu0 0.0
  %232 = vmatpush1.msra.mxu0 0.0
  %233 = vmatprep.subr.mxu0 0.0
  %234 = vmatpush1.msra.mxu0 0.0
  %235 = vmatprep.subr.mxu0 0.0
  %236 = vmatpush1.msra.mxu0 0.0
  %237 = vmatprep.mubr.f32.mxu0 0.0
  %238 = vmatmul.mubr.f32.gmra.mrb[0].mxu0 %v60
  %v239 = vpop.f32.mrb[0].mxu0
  %v240 = vadd.f32 %v41, %v239
  %v241 = vpop.f32.mrb[0].mxu0
  %v242 = vadd.f32 %v41, %v241
  %243 = vmatprep.mubr.f32.mxu0 0.0
  %244 = vmatmul.mubr.f32.gmra.mrb[0].mxu0 %v63
  %v245 = vpop.f32.mrb[0].mxu0
  %v246 = vadd.f32 %v46, %v245
  %v247 = vpop.f32.mrb[0].mxu0
  %v248 = vadd.f32 %v46, %v247
  %249 = vmatprep.mubr.f32.mxu0 0.0
  %250 = vmatmul.mubr.f32.gmra.mrb[0].mxu0 %v66
  %v251 = vpop.f32.mrb[0].mxu0
  %v252 = vadd.f32 %v51, %v251
  %v253 = vpop.f32.mrb[0].mxu0
  %v254 = vadd.f32 %v51, %v253
  %255 = vmatprep.mubr.f32.mxu0 0.0
  %256 = vmatmul.mubr.f32.gmra.mrb[0].mxu0 %v69
  %v257 = vpop.f32.mrb[0].mxu0
  %v258 = vadd.f32 %v56, %v257
  %v259 = vpop.f32.mrb[0].mxu0
  %v260 = vadd.f32 %v56, %v259
  %261 = vdwg.mxu0
  %v262 = vtanh.pop %v151
  %v263 = vtanh.pop %v153
  %v264 = vtanh.pop %v240
  %v265 = vtanh.pop %v242
  %v266 = vtanh.pop %v157
  %v267 = vtanh.pop %v159
  %v268 = vtanh.pop %v246
  %v269 = vtanh.pop %v248
  %v270 = vtanh.pop %v163
  %v271 = vtanh.pop %v165
  %v272 = vtanh.pop %v252
  %v273 = vtanh.pop %v254
  %v274 = vtanh.pop %v169
  %v275 = vtanh.pop %v171
  %v276 = vtanh.pop %v258
  %v277 = vtanh.pop %v260
  %v278 = vld [vmem:[%s3] sm:$0xff]
  %v279 = vld [vmem:[%s3 + $0x8] sm:$0xff]
  %v280 = vld [vmem:[%s3 + $0x10] sm:$0xff]
  %v281 = vld [vmem:[%s3 + $0x18] sm:$0xff]
  %v282 = vld [vmem:[%s4] sm:$0xff]
  %v283 = vld [vmem:[%s4 + $0x8] sm:$0xff]
  %v284 = vld [vmem:[%s4 + $0x10] sm:$0xff]
  %v285 = vld [vmem:[%s4 + $0x18] sm:$0xff]
  %287 = vset.pattern.permute.xlu0 0
  %288 = vperm.xlu0 %287, %v282
  %v289 = vpop.permute.xlu0 %288
  %292 = vset.pattern.permute.xlu0 0
  %293 = vperm.xlu0 %292, %v283
  %v294 = vpop.permute.xlu0 %293
  %297 = vset.pattern.permute.xlu0 0
  %298 = vperm.xlu0 %297, %v284
  %v299 = vpop.permute.xlu0 %298
  %302 = vset.pattern.permute.xlu0 0
  %303 = vperm.xlu0 %302, %v285
  %v304 = vpop.permute.xlu0 %303
  %vm306 = vcmask 261120
  %v308 = vsel %vm306, %v278, 0
  %v311 = vsel %vm306, %v279, 0
  %v314 = vsel %vm306, %v280, 0
  %v317 = vsel %vm306, %v281, 0
  %319 = vmatprep.subr.mxu0 %v263
  %320 = vmatpush1.msra.mxu0 %v262
  %321 = vmatprep.subr.mxu0 %v267
  %322 = vmatpush1.msra.mxu0 %v266
  %323 = vmatprep.subr.mxu0 %v271
  %324 = vmatpush1.msra.mxu0 %v270
  %325 = vmatprep.subr.mxu0 %v275
  %326 = vmatpush1.msra.mxu0 %v274
  %327 = vmatprep.subr.mxu0 0.0
  %328 = vmatpush1.msra.mxu0 0.0
  %329 = vmatprep.subr.mxu0 0.0
  %330 = vmatpush1.msra.mxu0 0.0
  %331 = vmatprep.subr.mxu0 0.0
  %332 = vmatpush1.msra.mxu0 0.0
  %333 = vmatprep.subr.mxu0 0.0
  %334 = vmatpush1.msra.mxu0 0.0
  %335 = vmatprep.subr.mxu0 0.0
  %336 = vmatpush1.msra.mxu0 0.0
  %337 = vmatprep.subr.mxu0 0.0
  %338 = vmatpush1.msra.mxu0 0.0
  %339 = vmatprep.subr.mxu0 0.0
  %340 = vmatpush1.msra.mxu0 0.0
  %341 = vmatprep.subr.mxu0 0.0
  %342 = vmatpush1.msra.mxu0 0.0
  %343 = vmatprep.subr.mxu0 0.0
  %344 = vmatpush1.msra.mxu0 0.0
  %345 = vmatprep.subr.mxu0 0.0
  %346 = vmatpush1.msra.mxu0 0.0
  %347 = vmatprep.subr.mxu0 0.0
  %348 = vmatpush1.msra.mxu0 0.0
  %349 = vmatprep.subr.mxu0 0.0
  %350 = vmatpush1.msra.mxu0 0.0
  %351 = vmatprep.subr.mxu0 0.0
  %352 = vmatpush1.msra.mxu0 0.0
  %353 = vmatprep.subr.mxu0 0.0
  %354 = vmatpush1.msra.mxu0 0.0
  %355 = vmatprep.subr.mxu0 0.0
  %356 = vmatpush1.msra.mxu0 0.0
  %357 = vmatprep.subr.mxu0 0.0
  %358 = vmatpush1.msra.mxu0 0.0
  %359 = vmatprep.subr.mxu0 0.0
  %360 = vmatpush1.msra.mxu0 0.0
  %361 = vmatprep.subr.mxu0 0.0
  %362 = vmatpush1.msra.mxu0 0.0
  %363 = vmatprep.subr.mxu0 0.0
  %364 = vmatpush1.msra.mxu0 0.0
  %365 = vmatprep.subr.mxu0 0.0
  %366 = vmatpush1.msra.mxu0 0.0
  %367 = vmatprep.subr.mxu0 0.0
  %368 = vmatpush1.msra.mxu0 0.0
  %369 = vmatprep.subr.mxu0 0.0
  %370 = vmatpush1.msra.mxu0 0.0
  %371 = vmatprep.subr.mxu0 0.0
  %372 = vmatpush1.msra.mxu0 0.0
  %373 = vmatprep.subr.mxu0 0.0
  %374 = vmatpush1.msra.mxu0 0.0
  %375 = vmatprep.subr.mxu0 0.0
  %376 = vmatpush1.msra.mxu0 0.0
  %377 = vmatprep.subr.mxu0 0.0
  %378 = vmatpush1.msra.mxu0 0.0
  %379 = vmatprep.subr.mxu0 0.0
  %380 = vmatpush1.msra.mxu0 0.0
  %381 = vmatprep.subr.mxu0 0.0
  %382 = vmatpush1.msra.mxu0 0.0
  %383 = vmatprep.mubr.f32.mxu0 0.0
  %384 = vmatmul.mubr.f32.gmra.mrb[0].mxu0 %v308
  %v385 = vpop.f32.mrb[0].mxu0
  %v386 = vadd.f32 %v289, %v385
  %v387 = vpop.f32.mrb[0].mxu0
  %v388 = vadd.f32 %v289, %v387
  %389 = vmatprep.mubr.f32.mxu0 0.0
  %390 = vmatmul.mubr.f32.gmra.mrb[0].mxu0 %v311
  %v391 = vpop.f32.mrb[0].mxu0
  %v392 = vadd.f32 %v294, %v391
  %v393 = vpop.f32.mrb[0].mxu0
  %v394 = vadd.f32 %v294, %v393
  %395 = vmatprep.mubr.f32.mxu0 0.0
  %396 = vmatmul.mubr.f32.gmra.mrb[0].mxu0 %v314
  %v397 = vpop.f32.mrb[0].mxu0
  %v398 = vadd.f32 %v299, %v397
  %v399 = vpop.f32.mrb[0].mxu0
  %v400 = vadd.f32 %v299, %v399
  %401 = vmatprep.mubr.f32.mxu0 0.0
  %402 = vmatmul.mubr.f32.gmra.mrb[0].mxu0 %v317
  %v403 = vpop.f32.mrb[0].mxu0
  %v404 = vadd.f32 %v304, %v403
  %v405 = vpop.f32.mrb[0].mxu0
  %v406 = vadd.f32 %v304, %v405
  %407 = vdwg.mxu0
  %408 = vmatprep.subr.mxu0 %v265
  %409 = vmatpush1.msra.mxu0 %v264
  %410 = vmatprep.subr.mxu0 %v269
  %411 = vmatpush1.msra.mxu0 %v268
  %412 = vmatprep.subr.mxu0 %v273
  %413 = vmatpush1.msra.mxu0 %v272
  %414 = vmatprep.subr.mxu0 %v277
  %415 = vmatpush1.msra.mxu0 %v276
  %416 = vmatprep.subr.mxu0 0.0
  %417 = vmatpush1.msra.mxu0 0.0
  %418 = vmatprep.subr.mxu0 0.0
  %419 = vmatpush1.msra.mxu0 0.0
  %420 = vmatprep.subr.mxu0 0.0
  %421 = vmatpush1.msra.mxu0 0.0
  %422 = vmatprep.subr.mxu0 0.0
  %423 = vmatpush1.msra.mxu0 0.0
  %424 = vmatprep.subr.mxu0 0.0
  %425 = vmatpush1.msra.mxu0 0.0
  %426 = vmatprep.subr.mxu0 0.0
  %427 = vmatpush1.msra.mxu0 0.0
  %428 = vmatprep.subr.mxu0 0.0
  %429 = vmatpush1.msra.mxu0 0.0
  %430 = vmatprep.subr.mxu0 0.0
  %431 = vmatpush1.msra.mxu0 0.0
  %432 = vmatprep.subr.mxu0 0.0
  %433 = vmatpush1.msra.mxu0 0.0
  %434 = vmatprep.subr.mxu0 0.0
  %435 = vmatpush1.msra.mxu0 0.0
  %436 = vmatprep.subr.mxu0 0.0
  %437 = vmatpush1.msra.mxu0 0.0
  %438 = vmatprep.subr.mxu0 0.0
  %439 = vmatpush1.msra.mxu0 0.0
  %440 = vmatprep.subr.mxu0 0.0
  %441 = vmatpush1.msra.mxu0 0.0
  %442 = vmatprep.subr.mxu0 0.0
  %443 = vmatpush1.msra.mxu0 0.0
  %444 = vmatprep.subr.mxu0 0.0
  %445 = vmatpush1.msra.mxu0 0.0
  %446 = vmatprep.subr.mxu0 0.0
  %447 = vmatpush1.msra.mxu0 0.0
  %448 = vmatprep.subr.mxu0 0.0
  %449 = vmatpush1.msra.mxu0 0.0
  %450 = vmatprep.subr.mxu0 0.0
  %451 = vmatpush1.msra.mxu0 0.0
  %452 = vmatprep.subr.mxu0 0.0
  %453 = vmatpush1.msra.mxu0 0.0
  %454 = vmatprep.subr.mxu0 0.0
  %455 = vmatpush1.msra.mxu0 0.0
  %456 = vmatprep.subr.mxu0 0.0
  %457 = vmatpush1.msra.mxu0 0.0
  %458 = vmatprep.subr.mxu0 0.0
  %459 = vmatpush1.msra.mxu0 0.0
  %460 = vmatprep.subr.mxu0 0.0
  %461 = vmatpush1.msra.mxu0 0.0
  %462 = vmatprep.subr.mxu0 0.0
  %463 = vmatpush1.msra.mxu0 0.0
  %464 = vmatprep.subr.mxu0 0.0
  %465 = vmatpush1.msra.mxu0 0.0
  %466 = vmatprep.subr.mxu0 0.0
  %467 = vmatpush1.msra.mxu0 0.0
  %468 = vmatprep.subr.mxu0 0.0
  %469 = vmatpush1.msra.mxu0 0.0
  %470 = vmatprep.subr.mxu0 0.0
  %471 = vmatpush1.msra.mxu0 0.0
  %472 = vmatprep.mubr.f32.mxu0 0.0
  %473 = vmatmul.mubr.f32.gmra.mrb[0].mxu0 %v308
  %v474 = vpop.f32.mrb[0].mxu0
  %v475 = vadd.f32 %v289, %v474
  %v476 = vpop.f32.mrb[0].mxu0
  %v477 = vadd.f32 %v289, %v476
  %478 = vmatprep.mubr.f32.mxu0 0.0
  %479 = vmatmul.mubr.f32.gmra.mrb[0].mxu0 %v311
  %v480 = vpop.f32.mrb[0].mxu0
  %v481 = vadd.f32 %v294, %v480
  %v482 = vpop.f32.mrb[0].mxu0
  %v483 = vadd.f32 %v294, %v482
  %484 = vmatprep.mubr.f32.mxu0 0.0
  %485 = vmatmul.mubr.f32.gmra.mrb[0].mxu0 %v314
  %v486 = vpop.f32.mrb[0].mxu0
  %v487 = vadd.f32 %v299, %v486
  %v488 = vpop.f32.mrb[0].mxu0
  %v489 = vadd.f32 %v299, %v488
  %490 = vmatprep.mubr.f32.mxu0 0.0
  %491 = vmatmul.mubr.f32.gmra.mrb[0].mxu0 %v317
  %v492 = vpop.f32.mrb[0].mxu0
  %v493 = vadd.f32 %v304, %v492
  %v494 = vpop.f32.mrb[0].mxu0
  %v495 = vadd.f32 %v304, %v494
  %496 = vdwg.mxu0
  %v497 = vtanh.pop %v386
  %v498 = vtanh.pop %v388
  %v499 = vtanh.pop %v475
  %v500 = vtanh.pop %v477
  %v501 = vtanh.pop %v392
  %v502 = vtanh.pop %v394
  %v503 = vtanh.pop %v481
  %v504 = vtanh.pop %v483
  %v505 = vtanh.pop %v398
  %v506 = vtanh.pop %v400
  %v507 = vtanh.pop %v487
  %v508 = vtanh.pop %v489
  %v509 = vtanh.pop %v404
  %v510 = vtanh.pop %v406
  %v511 = vtanh.pop %v493
  %v512 = vtanh.pop %v495
  %v513 = vld [vmem:[%s5] sm:$0xff]
  %v514 = vld [vmem:[%s6] sm:$0xff]
  %516 = vset.pattern.permute.xlu0 0
  %517 = vperm.xlu0 %516, %v514
  %v518 = vpop.permute.xlu0 %517
  %v521 = vsel %vm306, %v513, 0
  %523 = vmatprep.subr.mxu0 %v498
  %524 = vmatpush1.msra.mxu0 %v497
  %525 = vmatprep.subr.mxu0 %v502
  %526 = vmatpush1.msra.mxu0 %v501
  %527 = vmatprep.subr.mxu0 %v506
  %528 = vmatpush1.msra.mxu0 %v505
  %529 = vmatprep.subr.mxu0 %v510
  %530 = vmatpush1.msra.mxu0 %v509
  %531 = vmatprep.subr.mxu0 0.0
  %532 = vmatpush1.msra.mxu0 0.0
  %533 = vmatprep.subr.mxu0 0.0
  %534 = vmatpush1.msra.mxu0 0.0
  %535 = vmatprep.subr.mxu0 0.0
  %536 = vmatpush1.msra.mxu0 0.0
  %537 = vmatprep.subr.mxu0 0.0
  %538 = vmatpush1.msra.mxu0 0.0
  %539 = vmatprep.subr.mxu0 0.0
  %540 = vmatpush1.msra.mxu0 0.0
  %541 = vmatprep.subr.mxu0 0.0
  %542 = vmatpush1.msra.mxu0 0.0
  %543 = vmatprep.subr.mxu0 0.0
  %544 = vmatpush1.msra.mxu0 0.0
  %545 = vmatprep.subr.mxu0 0.0
  %546 = vmatpush1.msra.mxu0 0.0
  %547 = vmatprep.subr.mxu0 0.0
  %548 = vmatpush1.msra.mxu0 0.0
  %549 = vmatprep.subr.mxu0 0.0
  %550 = vmatpush1.msra.mxu0 0.0
  %551 = vmatprep.subr.mxu0 0.0
  %552 = vmatpush1.msra.mxu0 0.0
  %553 = vmatprep.subr.mxu0 0.0
  %554 = vmatpush1.msra.mxu0 0.0
  %555 = vmatprep.subr.mxu0 0.0
  %556 = vmatpush1.msra.mxu0 0.0
  %557 = vmatprep.subr.mxu0 0.0
  %558 = vmatpush1.msra.mxu0 0.0
  %559 = vmatprep.subr.mxu0 0.0
  %560 = vmatpush1.msra.mxu0 0.0
  %561 = vmatprep.subr.mxu0 0.0
  %562 = vmatpush1.msra.mxu0 0.0
  %563 = vmatprep.subr.mxu0 0.0
  %564 = vmatpush1.msra.mxu0 0.0
  %565 = vmatprep.subr.mxu0 0.0
  %566 = vmatpush1.msra.mxu0 0.0
  %567 = vmatprep.subr.mxu0 0.0
  %568 = vmatpush1.msra.mxu0 0.0
  %569 = vmatprep.subr.mxu0 0.0
  %570 = vmatpush1.msra.mxu0 0.0
  %571 = vmatprep.subr.mxu0 0.0
  %572 = vmatpush1.msra.mxu0 0.0
  %573 = vmatprep.subr.mxu0 0.0
  %574 = vmatpush1.msra.mxu0 0.0
  %575 = vmatprep.subr.mxu0 0.0
  %576 = vmatpush1.msra.mxu0 0.0
  %577 = vmatprep.subr.mxu0 0.0
  %578 = vmatpush1.msra.mxu0 0.0
  %579 = vmatprep.subr.mxu0 0.0
  %580 = vmatpush1.msra.mxu0 0.0
  %581 = vmatprep.subr.mxu0 0.0
  %582 = vmatpush1.msra.mxu0 0.0
  %583 = vmatprep.subr.mxu0 0.0
  %584 = vmatpush1.msra.mxu0 0.0
  %585 = vmatprep.subr.mxu0 0.0
  %586 = vmatpush1.msra.mxu0 0.0
  %587 = vmatprep.mubr.f32.mxu0 0.0
  %588 = vmatmul.mubr.f32.gmra.mrb[0].mxu0 %v521
  %v589 = vpop.f32.mrb[0].mxu0
  %v590 = vadd.f32 %v518, %v589
  %v591 = vpop.f32.mrb[0].mxu0
  %v592 = vadd.f32 %v518, %v591
  %593 = vdwg.mxu0
  %594 = vmatprep.subr.mxu0 %v500
  %595 = vmatpush1.msra.mxu0 %v499
  %596 = vmatprep.subr.mxu0 %v504
  %597 = vmatpush1.msra.mxu0 %v503
  %598 = vmatprep.subr.mxu0 %v508
  %599 = vmatpush1.msra.mxu0 %v507
  %600 = vmatprep.subr.mxu0 %v512
  %601 = vmatpush1.msra.mxu0 %v511
  %602 = vmatprep.subr.mxu0 0.0
  %603 = vmatpush1.msra.mxu0 0.0
  %604 = vmatprep.subr.mxu0 0.0
  %605 = vmatpush1.msra.mxu0 0.0
  %606 = vmatprep.subr.mxu0 0.0
  %607 = vmatpush1.msra.mxu0 0.0
  %608 = vmatprep.subr.mxu0 0.0
  %609 = vmatpush1.msra.mxu0 0.0
  %610 = vmatprep.subr.mxu0 0.0
  %611 = vmatpush1.msra.mxu0 0.0
  %612 = vmatprep.subr.mxu0 0.0
  %613 = vmatpush1.msra.mxu0 0.0
  %614 = vmatprep.subr.mxu0 0.0
  %615 = vmatpush1.msra.mxu0 0.0
  %616 = vmatprep.subr.mxu0 0.0
  %617 = vmatpush1.msra.mxu0 0.0
  %618 = vmatprep.subr.mxu0 0.0
  %619 = vmatpush1.msra.mxu0 0.0
  %620 = vmatprep.subr.mxu0 0.0
  %621 = vmatpush1.msra.mxu0 0.0
  %622 = vmatprep.subr.mxu0 0.0
  %623 = vmatpush1.msra.mxu0 0.0
  %624 = vmatprep.subr.mxu0 0.0
  %625 = vmatpush1.msra.mxu0 0.0
  %626 = vmatprep.subr.mxu0 0.0
  %627 = vmatpush1.msra.mxu0 0.0
  %628 = vmatprep.subr.mxu0 0.0
  %629 = vmatpush1.msra.mxu0 0.0
  %630 = vmatprep.subr.mxu0 0.0
  %631 = vmatpush1.msra.mxu0 0.0
  %632 = vmatprep.subr.mxu0 0.0
  %633 = vmatpush1.msra.mxu0 0.0
  %634 = vmatprep.subr.mxu0 0.0
  %635 = vmatpush1.msra.mxu0 0.0
  %636 = vmatprep.subr.mxu0 0.0
  %637 = vmatpush1.msra.mxu0 0.0
  %638 = vmatprep.subr.mxu0 0.0
  %639 = vmatpush1.msra.mxu0 0.0
  %640 = vmatprep.subr.mxu0 0.0
  %641 = vmatpush1.msra.mxu0 0.0
  %642 = vmatprep.subr.mxu0 0.0
  %643 = vmatpush1.msra.mxu0 0.0
  %644 = vmatprep.subr.mxu0 0.0
  %645 = vmatpush1.msra.mxu0 0.0
  %646 = vmatprep.subr.mxu0 0.0
  %647 = vmatpush1.msra.mxu0 0.0
  %648 = vmatprep.subr.mxu0 0.0
  %649 = vmatpush1.msra.mxu0 0.0
  %650 = vmatprep.subr.mxu0 0.0
  %651 = vmatpush1.msra.mxu0 0.0
  %652 = vmatprep.subr.mxu0 0.0
  %653 = vmatpush1.msra.mxu0 0.0
  %654 = vmatprep.subr.mxu0 0.0
  %655 = vmatpush1.msra.mxu0 0.0
  %656 = vmatprep.subr.mxu0 0.0
  %657 = vmatpush1.msra.mxu0 0.0
  %658 = vmatprep.mubr.f32.mxu0 0.0
  %659 = vmatmul.mubr.f32.gmra.mrb[0].mxu0 %v521
  %v660 = vpop.f32.mrb[0].mxu0
  %v661 = vadd.f32 %v518, %v660
  %v662 = vpop.f32.mrb[0].mxu0
  %v663 = vadd.f32 %v518, %v662
  %664 = vdwg.mxu0
  %665 = vst [vmem:[%s7] sm:$0xff] %v590
  %666 = vst [vmem:[%s7 + $0x8] sm:$0xff] %v592
  %667 = vst [vmem:[%s7 + $0x10] sm:$0xff] %v661
  %668 = vst [vmem:[%s7 + $0x18] sm:$0xff] %v663
  // Predicated region
  $region30: #{mlp_grad_complex_forward.1} parent=0 // pred_check
    _
  $region31: #{mlp_grad_complex_forward.1} parent=0 // pred_check_branch
    %670 = sbr.rel (0) target = $region33
  $region32: #{mlp_grad_complex_forward.1} parent=0 // pred_region
    _
  $region33: #{mlp_grad_complex_forward.1} parent=0 // pred_fallthru
    _
  // Predicated region
  $region34: #{mlp_grad_complex_forward.1} parent=0 // pred_check
    _
  $region35: #{mlp_grad_complex_forward.1} parent=0 // pred_check_branch
    %672 = sbr.rel (0) target = $region37
  $region36: #{mlp_grad_complex_forward.1} parent=0 // pred_region
    _
  $region37: #{mlp_grad_complex_forward.1} parent=0 // pred_fallthru
    _

</llo_original>
